<compile_context>
chip_gen: v7x
topology: tpu7x:2x2x1
jax: 0.10.0
libtpu: 0.0.40
codegen_flags: <defaults>
</compile_context>

<pallas_src>
import functools

import jax
import jax.numpy as jnp
from jax.experimental import pallas as pl
from jax.experimental.pallas import tpu as pltpu

EPS = 1e-5          # nn.BatchNorm2d default eps
_TILE_M = 1024      # lane tile over M (multiple of 128), clamped to the problem


def _round_up(x, m):
    return (x + m - 1) // m * m


def _mosaic_params(semantics, per_step_bytes):
    # 2 pipeline buffers per tiled operand + headroom, capped at 32 MiB so the
    # same tiling also fits v7x's smaller (64 MiB physical) VMEM.
    need = 2 * per_step_bytes + (4 << 20)
    return pltpu.CompilerParams(
        dimension_semantics=semantics,
        vmem_limit_bytes=int(min(need, 32 << 20)),
    )


# ----------------------------- Pallas kernels --------------------------------
def _conv_stats_kernel(w_ref, b_ref, a_ref, y_ref, mean_ref, rstd_ref,
                       sum_ref, sumsq_ref, *, m_true):
    """Pass 1: conv-as-matmul + bias, accumulate global BN batch statistics.

    w_ref    : (C_pad, K)       conv weights, transposed matmul layout
    b_ref    : (C_pad, 1)       conv bias (f32)
    a_ref    : (K, TILE_M)      im2col patches, transposed (pipelined tile)
    y_ref    : (C_pad, TILE_M)  pre-BN conv output (f32, lane-dense store)
    mean_ref : (C_pad, 1)       per-channel batch mean   (written at last step)
    rstd_ref : (C_pad, 1)       per-channel 1/sqrt(var+eps)
    sum/sumsq: (C_pad, 1)       f32 VMEM accumulators across M tiles
    """
    i = pl.program_id(0)
    tile_m = a_ref.shape[1]

    @pl.when(i == 0)
    def _init():
        sum_ref[...] = jnp.zeros_like(sum_ref)
        sumsq_ref[...] = jnp.zeros_like(sumsq_ref)

    # Conv as matmul on the MXU (bf16 inputs, f32 accumulation); bias in f32.
    y = jnp.dot(w_ref[...], a_ref[...], preferred_element_type=jnp.float32)
    y = y + b_ref[...]
    y_ref[...] = y                                   # lane-dense (C, tile_m)

    # Mask out zero-padded columns beyond the true M so they do not pollute
    # the batch statistics.
    col = jax.lax.broadcasted_iota(jnp.int32, y.shape, 1) + i * tile_m
    yv = jnp.where(col < m_true, y, 0.0)
    sum_ref[...] += jnp.sum(yv, axis=1, keepdims=True)
    sumsq_ref[...] += jnp.sum(yv * yv, axis=1, keepdims=True)

    @pl.when(i == pl.num_programs(0) - 1)
    def _finalize():
        inv_m = 1.0 / m_true                          # static Python float
        mean = sum_ref[...] * inv_m
        var = jnp.maximum(sumsq_ref[...] * inv_m - mean * mean, 0.0)
        mean_ref[...] = mean
        rstd_ref[...] = jax.lax.rsqrt(var + EPS)


def _bn_relu_kernel(y_ref, mean_ref, rstd_ref, gamma_ref, beta_ref, o_ref):
    """Pass 2: apply BatchNorm (batch stats) + ReLU, lane-dense tiles."""
    scale = rstd_ref[...] * gamma_ref[...]            # (C, 1), f32
    shift = beta_ref[...] - mean_ref[...] * scale     # (C, 1)
    o_ref[...] = jnp.maximum(y_ref[...] * scale + shift, 0.0)


# ------------------------------ layer wrapper ---------------------------------
def _encoder_layer_pallas(at, w_t, bias, gamma, beta, *, compute_dtype):
    """One EncoderLayer on (K, M) transposed im2col input. Returns (Cout, M)."""
    k, m = at.shape
    c_out = w_t.shape[0]

    c_pad = _round_up(c_out, 8)
    tile_m = min(_TILE_M, _round_up(m, 128))
    m_pad = _round_up(m, tile_m)
    n_tiles = m_pad // tile_m

    at_p = jnp.pad(at, ((0, 0), (0, m_pad - m))).astype(compute_dtype)
    w_p = jnp.pad(w_t, ((0, c_pad - c_out), (0, 0))).astype(compute_dtype)
    bias_p = jnp.pad(bias.reshape(-1, 1), ((0, c_pad - c_out), (0, 0))).astype(jnp.float32)
    gamma_p = jnp.pad(gamma.reshape(-1, 1), ((0, c_pad - c_out), (0, 0))).astype(jnp.float32)
    beta_p = jnp.pad(beta.reshape(-1, 1), ((0, c_pad - c_out), (0, 0))).astype(jnp.float32)

    isz = jnp.dtype(compute_dtype).itemsize
    p1_bytes = k * tile_m * isz + c_pad * k * isz + c_pad * tile_m * 4 + 8 * c_pad * 4
    p2_bytes = 2 * c_pad * tile_m * 4 + 4 * c_pad * 4

    # ---- pass 1: conv (matmul) + bias, global BN statistics ------------------
    y, mean, rstd = pl.pallas_call(
        functools.partial(_conv_stats_kernel, m_true=m),
        grid=(n_tiles,),
        in_specs=(
            pl.BlockSpec((c_pad, k), lambda i: (0, 0)),        # W^T   (resident)
            pl.BlockSpec((c_pad, 1), lambda i: (0, 0)),        # bias  (resident)
            pl.BlockSpec((k, tile_m), lambda i: (0, i)),       # A^T   (pipelined)
        ),
        out_specs=(
            pl.BlockSpec((c_pad, tile_m), lambda i: (0, i)),   # y (lane-dense)
            pl.BlockSpec((c_pad, 1), lambda i: (0, 0)),        # mean
            pl.BlockSpec((c_pad, 1), lambda i: (0, 0)),        # rstd
        ),
        out_shape=(
            jax.ShapeDtypeStruct((c_pad, m_pad), jnp.float32),
            jax.ShapeDtypeStruct((c_pad, 1), jnp.float32),
            jax.ShapeDtypeStruct((c_pad, 1), jnp.float32),
        ),
        scratch_shapes=[pltpu.VMEM((c_pad, 1), jnp.float32),
                        pltpu.VMEM((c_pad, 1), jnp.float32)],
        compiler_params=_mosaic_params(("arbitrary",), p1_bytes),
    )(w_p, bias_p, at_p)

    # ---- pass 2: normalize + ReLU (embarrassingly parallel over M tiles) -----
    out = pl.pallas_call(
        _bn_relu_kernel,
        grid=(n_tiles,),
        in_specs=(
            pl.BlockSpec((c_pad, tile_m), lambda i: (0, i)),   # y
            pl.BlockSpec((c_pad, 1), lambda i: (0, 0)),        # mean
            pl.BlockSpec((c_pad, 1), lambda i: (0, 0)),        # rstd
            pl.BlockSpec((c_pad, 1), lambda i: (0, 0)),        # gamma
            pl.BlockSpec((c_pad, 1), lambda i: (0, 0)),        # beta
        ),
        out_specs=pl.BlockSpec((c_pad, tile_m), lambda i: (0, i)),
        out_shape=jax.ShapeDtypeStruct((c_pad, m_pad), jnp.float32),
        compiler_params=_mosaic_params(("parallel",), p2_bytes),
    )(y, mean, rstd, gamma_p, beta_p)

    return out[:c_out, :m]                                     # (Cout, M)


# ------------------------------- JAX glue -------------------------------------
def _im2col_transposed(x_nhwc, stride):
    """3x3 / pad=1 im2col in transposed (K=9*Cin, M=N*Ho*Wo) layout.

    K is ordered (kh, kw, cin) to match the weight reshape below.
    TODO(synk): fold the tap extraction into the Pallas kernel to avoid the
    9x im2col HBM blow-up entirely.
    """
    n, h, w, c = x_nhwc.shape
    xp = jnp.pad(x_nhwc, ((0, 0), (1, 1), (1, 1), (0, 0)))
    h_out = (h + 2 - 3) // stride + 1
    w_out = (w + 2 - 3) // stride + 1
    taps = []
    for kh in range(3):
        for kw in range(3):
            taps.append(jax.lax.slice(
                xp,
                (0, kh, kw, 0),
                (n, kh + (h_out - 1) * stride + 1, kw + (w_out - 1) * stride + 1, c),
                (1, stride, stride, 1)))                        # (N, Ho, Wo, C)
    patches = jnp.stack(taps, axis=0)                           # (9, N, Ho, Wo, C)
    at = jnp.transpose(patches, (0, 4, 1, 2, 3)).reshape(9 * c, n * h_out * w_out)
    return at, (n, h_out, w_out)


class EncoderBlockPallas:
    """Mirror of the PyTorch EncoderBlock (deterministic synthetic params)."""

    def __init__(self, num_layers, in_channels, hidden_channels, out_channels,
                 downsample, key, compute_dtype=jnp.bfloat16):
        assert downsample in {None, "conv", "pool"}
        self.compute_dtype = compute_dtype   # bf16 matmul inputs (v6e/v7x MXU)
        self.layers = []
        from_channels = in_channels
        ds = downsample
        for layer_idx in range(num_layers):
            to_channels = out_channels if layer_idx == num_layers - 1 else hidden_channels
            stride = 2 if ds == "conv" else 1
            pool = ds == "pool"
            key, kw_, kb_, kg_, kbe_ = jax.random.split(key, 5)
            w_oihw = (jax.random.normal(kw_, (to_channels, from_channels, 3, 3),
                                        jnp.float32)
                      * (1.0 / jnp.sqrt(9.0 * from_channels)))
            bias = 0.1 * jax.random.normal(kb_, (to_channels,), jnp.float32)
            gamma = 1.0 + 0.1 * jax.random.normal(kg_, (to_channels,), jnp.float32)
            beta = 0.1 * jax.random.normal(kbe_, (to_channels,), jnp.float32)
            # (Cout, Cin, 3, 3) -> (Cout, 9*Cin), K ordered (kh, kw, cin).
            w_t = jnp.transpose(w_oihw, (0, 2, 3, 1)).reshape(to_channels,
                                                              9 * from_channels)
            self.layers.append(dict(w_oihw=w_oihw, w_t=w_t, bias=bias, gamma=gamma,
                                    beta=beta, stride=stride, pool=pool))
            ds = None
            from_channels = to_channels

    def __call__(self, x_nchw):
        y = jnp.transpose(x_nchw, (0, 2, 3, 1)).astype(jnp.float32)   # NHWC
        for p in self.layers:
            at, (n, ho, wo) = _im2col_transposed(y, p["stride"])
            c_out = p["w_t"].shape[0]
            out_cm = _encoder_layer_pallas(
                at, p["w_t"], p["bias"], p["gamma"], p["beta"],
                compute_dtype=self.compute_dtype)                     # (Cout, M)
            y = out_cm.T.reshape(n, ho, wo, c_out)
            if p["pool"]:
                # TODO(synk): MaxPool2d(2,2) kept in plain JAX glue (demo config
                # uses downsample='conv'); assumes even spatial dims.
                y = y.reshape(n, ho // 2, 2, wo // 2, 2, c_out).max(axis=(2, 4))
        return jnp.transpose(y, (0, 3, 1, 2))                          # NCHW


# --------------------------- pure-JAX reference -------------------------------
def _reference_forward(x_nchw, block):
    y = x_nchw.astype(jnp.float32)
    for p in block.layers:
        s = p["stride"]
        y = jax.lax.conv_general_dilated(
            y, p["w_oihw"], (s, s), ((1, 1), (1, 1)),
            dimension_numbers=("NCHW", "OIHW", "NCHW"))
        y = y + p["bias"][None, :, None, None]
        mean = jnp.mean(y, axis=(0, 2, 3), keepdims=True)
        var = jnp.mean((y - mean) ** 2, axis=(0, 2, 3), keepdims=True)
        y = (y - mean) / jnp.sqrt(var + EPS)
        y = y * p["gamma"][None, :, None, None] + p["beta"][None, :, None, None]
        y = jnp.maximum(y, 0.0)
        if p["pool"]:
            n, c, h, w = y.shape
            y = y.reshape(n, c, h // 2, 2, w // 2, 2).max(axis=(3, 5))
    return y


# ----------------------------------- main --------------------------------------
if __name__ == "__main__":
    key = jax.random.PRNGKey(0)
    key, kx = jax.random.split(key)

    # EncoderBlock(num_layers=2, in_channels=4, hidden_channels=8,
    #              out_channels=8, downsample='conv')
    block = EncoderBlockPallas(num_layers=2, in_channels=4, hidden_channels=8,
                               out_channels=8, downsample="conv", key=key)

    x = jax.random.normal(kx, (2, 4, 16, 16), jnp.float32)   # NCHW like PyTorch

    ref = jax.block_until_ready(_reference_forward(x, block))

    # f32 matmul path: tight check against the f32 reference.
    block.compute_dtype = jnp.float32
    out_f32 = jax.block_until_ready(block(x))
    assert out_f32.shape == (2, 8, 8, 8), out_f32.shape
    assert jnp.allclose(out_f32, ref, atol=1e-3, rtol=1e-3), float(
        jnp.max(jnp.abs(out_f32 - ref)))

    # bf16 matmul path (default; high-throughput on v6e/v7x MXU, f32 accumulation
    # and f32 BN math): looser tolerance since BN rescales to unit variance.
    block.compute_dtype = jnp.bfloat16
    out_bf16 = jax.block_until_ready(block(x))
    assert out_bf16.shape == (2, 8, 8, 8), out_bf16.shape
    assert jnp.allclose(out_bf16, ref, atol=5e-2, rtol=5e-2), float(
        jnp.max(jnp.abs(out_bf16 - ref)))

    print("KERNEL_OK")
</pallas_src>

<mosaic_0001>
module attributes {stable_mosaic.version = 11 : i64} {
  func.func @_conv_stats_kernel(%arg0: i32, %arg1: memref<8x36xf32, #tpu.memory_space<vmem>>, %arg2: memref<8x1xf32, #tpu.memory_space<vmem>>, %arg3: memref<36x128xf32, #tpu.memory_space<vmem>>, %arg4: memref<8x128xf32, #tpu.memory_space<vmem>>, %arg5: memref<8x1xf32, #tpu.memory_space<vmem>>, %arg6: memref<8x1xf32, #tpu.memory_space<vmem>>, %arg7: memref<8x1xf32, #tpu.memory_space<vmem>>, %arg8: memref<8x1xf32, #tpu.memory_space<vmem>>) attributes {dimension_semantics = [#tpu.dimension_semantics<arbitrary>], iteration_bounds = array<i64: 1>, scalar_prefetch = 0 : i64, scratch_operands = 2 : i64, tpu.core_type = #tpu.core_type<tc>, window_params = [{pipeline_mode = #tpu.pipeline_mode<synchronous>, transform_indices = @transform_0, window_bounds = array<i64: 8, 36>}, {pipeline_mode = #tpu.pipeline_mode<synchronous>, transform_indices = @transform_1, window_bounds = array<i64: 8, 1>}, {transform_indices = @transform_2, window_bounds = array<i64: 36, 128>}, {transform_indices = @transform_3, window_bounds = array<i64: 8, 128>}, {pipeline_mode = #tpu.pipeline_mode<synchronous>, transform_indices = @transform_4, window_bounds = array<i64: 8, 1>}, {pipeline_mode = #tpu.pipeline_mode<synchronous>, transform_indices = @transform_5, window_bounds = array<i64: 8, 1>}]} {
    %c0_i32 = arith.constant 0 : i32
    %0 = arith.cmpi eq, %arg0, %c0_i32 : i32
    %1 = arith.extui %0 : i1 to i32
    %c0_i32_0 = arith.constant 0 : i32
    %2 = arith.cmpi ne, %1, %c0_i32_0 : i32
    scf.if %2 {
      %cst_22 = arith.constant 0.000000e+00 : f32
      %32 = vector.broadcast %cst_22 : f32 to vector<8x1xf32>
      %c0_23 = arith.constant 0 : index
      %c0_24 = arith.constant 0 : index
      %33 = vector.load %arg7[%c0_23, %c0_24] : memref<8x1xf32, #tpu.memory_space<vmem>>, vector<8x1xf32>
      tpu.vector_store %arg7[%c0_23, %c0_24], %32 {strides = array<i32>} : memref<8x1xf32, #tpu.memory_space<vmem>>, vector<8x1xf32>,
      %cst_25 = arith.constant 0.000000e+00 : f32
      %34 = vector.broadcast %cst_25 : f32 to vector<8x1xf32>
      %c0_26 = arith.constant 0 : index
      %c0_27 = arith.constant 0 : index
      %35 = vector.load %arg8[%c0_26, %c0_27] : memref<8x1xf32, #tpu.memory_space<vmem>>, vector<8x1xf32>
      tpu.vector_store %arg8[%c0_26, %c0_27], %34 {strides = array<i32>} : memref<8x1xf32, #tpu.memory_space<vmem>>, vector<8x1xf32>,
    } else {
    }
    %c0 = arith.constant 0 : index
    %c0_1 = arith.constant 0 : index
    %3 = vector.load %arg1[%c0, %c0_1] : memref<8x36xf32, #tpu.memory_space<vmem>>, vector<8x36xf32>
    %c0_2 = arith.constant 0 : index
    %c0_3 = arith.constant 0 : index
    %4 = vector.load %arg3[%c0_2, %c0_3] : memref<36x128xf32, #tpu.memory_space<vmem>>, vector<36x128xf32>
    %cst = arith.constant dense<0.000000e+00> : vector<8x128xf32>
    %5 = tpu.matmul %3, %4, %cst {dimension_numbers = #tpu.dot_dimension_numbers<[1], [0], [0], [1], [0, 0, 1, 1], [], []>} : vector<8x36xf32>, vector<36x128xf32>, vector<8x128xf32> -> vector<8x128xf32>
    %c0_4 = arith.constant 0 : index
    %c0_5 = arith.constant 0 : index
    %6 = vector.load %arg2[%c0_4, %c0_5] : memref<8x1xf32, #tpu.memory_space<vmem>>, vector<8x1xf32>
    %7 = vector.broadcast %6 : vector<8x1xf32> to vector<8x128xf32>
    %8 = arith.addf %5, %7 : vector<8x128xf32>
    %c0_6 = arith.constant 0 : index
    %c0_7 = arith.constant 0 : index
    %9 = vector.load %arg4[%c0_6, %c0_7] : memref<8x128xf32, #tpu.memory_space<vmem>>, vector<8x128xf32>
    tpu.vector_store %arg4[%c0_6, %c0_7], %8 {strides = array<i32>} : memref<8x128xf32, #tpu.memory_space<vmem>>, vector<8x128xf32>,
    %10 = tpu.iota {dimensions = array<i32: 1>} : vector<8x128xi32>
    %c128_i32 = arith.constant 128 : i32
    %11 = arith.muli %arg0, %c128_i32 : i32
    %12 = vector.broadcast %11 : i32 to vector<8x128xi32>
    %13 = arith.addi %10, %12 : vector<8x128xi32>
    %c128_i32_8 = arith.constant 128 : i32
    %14 = vector.broadcast %c128_i32_8 : i32 to vector<8x128xi32>
    %15 = arith.cmpi slt, %13, %14 : vector<8x128xi32>
    %cst_9 = arith.constant 0.000000e+00 : f32
    %16 = vector.broadcast %cst_9 : f32 to vector<8x128xf32>
    %17 = arith.select %15, %8, %16 : vector<8x128xi1>, vector<8x128xf32>
    %c0_10 = arith.constant 0 : index
    %c0_11 = arith.constant 0 : index
    %18 = vector.load %arg7[%c0_10, %c0_11] : memref<8x1xf32, #tpu.memory_space<vmem>>, vector<8x1xf32>
    %cst_12 = arith.constant dense<0.000000e+00> : vector<8xf32>
    %19 = vector.multi_reduction <add>, %17, %cst_12 [1] : vector<8x128xf32> to vector<8xf32>
    %20 = vector.shape_cast %19 : vector<8xf32> to vector<8x1xf32>
    %21 = arith.addf %18, %20 : vector<8x1xf32>
    %c0_13 = arith.constant 0 : index
    %c0_14 = arith.constant 0 : index
    %22 = vector.load %arg7[%c0_13, %c0_14] : memref<8x1xf32, #tpu.memory_space<vmem>>, vector<8x1xf32>
    tpu.vector_store %arg7[%c0_13, %c0_14], %21 {strides = array<i32>} : memref<8x1xf32, #tpu.memory_space<vmem>>, vector<8x1xf32>,
    %c0_15 = arith.constant 0 : index
    %c0_16 = arith.constant 0 : index
    %23 = vector.load %arg8[%c0_15, %c0_16] : memref<8x1xf32, #tpu.memory_space<vmem>>, vector<8x1xf32>
    %24 = arith.mulf %17, %17 : vector<8x128xf32>
    %cst_17 = arith.constant dense<0.000000e+00> : vector<8xf32>
    %25 = vector.multi_reduction <add>, %24, %cst_17 [1] : vector<8x128xf32> to vector<8xf32>
    %26 = vector.shape_cast %25 : vector<8xf32> to vector<8x1xf32>
    %27 = arith.addf %23, %26 : vector<8x1xf32>
    %c0_18 = arith.constant 0 : index
    %c0_19 = arith.constant 0 : index
    %28 = vector.load %arg8[%c0_18, %c0_19] : memref<8x1xf32, #tpu.memory_space<vmem>>, vector<8x1xf32>
    tpu.vector_store %arg8[%c0_18, %c0_19], %27 {strides = array<i32>} : memref<8x1xf32, #tpu.memory_space<vmem>>, vector<8x1xf32>,
    %c0_i32_20 = arith.constant 0 : i32
    %29 = arith.cmpi eq, %arg0, %c0_i32_20 : i32
    %30 = arith.extui %29 : i1 to i32
    %c0_i32_21 = arith.constant 0 : i32
    %31 = arith.cmpi ne, %30, %c0_i32_21 : i32
    scf.if %31 {
      %c0_22 = arith.constant 0 : index
      %c0_23 = arith.constant 0 : index
      %32 = vector.load %arg7[%c0_22, %c0_23] : memref<8x1xf32, #tpu.memory_space<vmem>>, vector<8x1xf32>
      %cst_24 = arith.constant 7.812500e-03 : f32
      %33 = vector.broadcast %cst_24 : f32 to vector<8x1xf32>
      %34 = arith.mulf %32, %33 : vector<8x1xf32>
      %c0_25 = arith.constant 0 : index
      %c0_26 = arith.constant 0 : index
      %35 = vector.load %arg8[%c0_25, %c0_26] : memref<8x1xf32, #tpu.memory_space<vmem>>, vector<8x1xf32>
      %cst_27 = arith.constant 7.812500e-03 : f32
      %36 = vector.broadcast %cst_27 : f32 to vector<8x1xf32>
      %37 = arith.mulf %35, %36 : vector<8x1xf32>
      %38 = arith.mulf %34, %34 : vector<8x1xf32>
      %39 = arith.subf %37, %38 : vector<8x1xf32>
      %cst_28 = arith.constant 0.000000e+00 : f32
      %40 = vector.broadcast %cst_28 : f32 to vector<8x1xf32>
      %41 = arith.maximumf %39, %40 : vector<8x1xf32>
      %c0_29 = arith.constant 0 : index
      %c0_30 = arith.constant 0 : index
      %42 = vector.load %arg5[%c0_29, %c0_30] : memref<8x1xf32, #tpu.memory_space<vmem>>, vector<8x1xf32>
      tpu.vector_store %arg5[%c0_29, %c0_30], %34 {strides = array<i32>} : memref<8x1xf32, #tpu.memory_space<vmem>>, vector<8x1xf32>,
      %cst_31 = arith.constant 9.99999974E-6 : f32
      %43 = vector.broadcast %cst_31 : f32 to vector<8x1xf32>
      %44 = arith.addf %41, %43 : vector<8x1xf32>
      %45 = math.rsqrt %44 : vector<8x1xf32>
      %c0_32 = arith.constant 0 : index
      %c0_33 = arith.constant 0 : index
      %46 = vector.load %arg6[%c0_32, %c0_33] : memref<8x1xf32, #tpu.memory_space<vmem>>, vector<8x1xf32>
      tpu.vector_store %arg6[%c0_32, %c0_33], %45 {strides = array<i32>} : memref<8x1xf32, #tpu.memory_space<vmem>>, vector<8x1xf32>,
    } else {
    }
    return
  }
  func.func @transform_0(%arg0: i32) -> (i32, i32) {
    %c0_i32 = arith.constant 0 : i32
    %c0_i32_0 = arith.constant 0 : i32
    %c0_i32_1 = arith.constant 0 : i32
    return %c0_i32, %c0_i32_0 : i32, i32
  }
  func.func @transform_1(%arg0: i32) -> (i32, i32) {
    %c0_i32 = arith.constant 0 : i32
    %c0_i32_0 = arith.constant 0 : i32
    %c0_i32_1 = arith.constant 0 : i32
    return %c0_i32, %c0_i32_0 : i32, i32
  }
  func.func @transform_2(%arg0: i32) -> (i32, i32) {
    %c0_i32 = arith.constant 0 : i32
    %c0_i32_0 = arith.constant 0 : i32
    return %c0_i32, %arg0 : i32, i32
  }
  func.func @transform_3(%arg0: i32) -> (i32, i32) {
    %c0_i32 = arith.constant 0 : i32
    %c0_i32_0 = arith.constant 0 : i32
    return %c0_i32, %arg0 : i32, i32
  }
  func.func @transform_4(%arg0: i32) -> (i32, i32) {
    %c0_i32 = arith.constant 0 : i32
    %c0_i32_0 = arith.constant 0 : i32
    %c0_i32_1 = arith.constant 0 : i32
    return %c0_i32, %c0_i32_0 : i32, i32
  }
  func.func @transform_5(%arg0: i32) -> (i32, i32) {
    %c0_i32 = arith.constant 0 : i32
    %c0_i32_0 = arith.constant 0 : i32
    %c0_i32_1 = arith.constant 0 : i32
    return %c0_i32, %c0_i32_0 : i32, i32
  }
}

</mosaic_0001>

<llo_original>
// kernel: tpu_custom_call.1
$region0: #{tpu_custom_call.1}
  #allocation0 [shape = 'u32[]', space=smem, size = 0x4, offset = 0x4, fixed_abs, tag = 'smem constant byte address 0x4 - core index']
  #allocation1 [shape = 'u32[144,128]{1,0:T(1,128)}', space=vmem, size = 0x12000, scoped, tag = 'internal scratch']
  #allocation2 [shape = 'f32[8,1]{1,0:T(8,128)}', space=vmem, size = 0x1000, scoped, tag = 'scratch operand']
  #allocation3 [shape = 'f32[8,1]{1,0:T(8,128)}', space=vmem, size = 0x1000, scoped, tag = 'scratch operand']
  %s0 = inlined_call_operand.vmem [shape: f32[8,36], index: 0, kind: input, shape index: {}]
  %s1 = inlined_call_operand.vmem [shape: f32[8,1], index: 1, kind: input, shape index: {}]
  %s2 = inlined_call_operand.hbm [shape: f32[36,128], index: 2, kind: input, shape index: {}]
  %s3 = inlined_call_operand.hbm [shape: f32[8,128], index: 3, kind: output, shape index: {0}]
  %s4 = inlined_call_operand.vmem [shape: f32[8,1], index: 4, kind: output, shape index: {1}]
  %s5 = inlined_call_operand.vmem [shape: f32[8,1], index: 5, kind: output, shape index: {2}]
  %6 = xla_tuple %s3, %s4, %s5
  %s7 = sld [smem:[#allocation0]]
  $region50: #{tpu_custom_call.1} parent=0
    _
  %s9 = ssub.s32 1, %s7
  %s10 = scalar_select 0, %s9, %s7
  $region1: #{tpu_custom_call.1} parent=0
    #allocation4 [shape = 'u8[20480]{0}', space=vmem, size = 0x5000, scoped, tag = 'input window, operand 2, single buffered']
    #allocation5 [shape = 's32[1]{0}', space=sflag, size = 0x4, scoped, tag = 'scoped memory for tpu_custom_call.1']
    #allocation6 [shape = 's32[1]{0}', space=sflag, size = 0x4, scoped, tag = 'scoped memory for tpu_custom_call.1']
    #allocation7 [shape = 'u8[4096]{0}', space=vmem, size = 0x1000, scoped, tag = 'output window, operand 0, single buffered']
    %11 = vsyncpa [#allocation5], 0
    %12 = vsyncpa [#allocation6], 0
    // Predicated region
    $region2: #{tpu_custom_call.1} parent=1 // pred_check
      _
    $region3: #{tpu_custom_call.1} parent=1 // pred_check_branch
      %14 = sbr.rel (0) target = $region5
    $region4: #{tpu_custom_call.1} parent=1 // pred_region
      _
    $region5: #{tpu_custom_call.1} parent=1 // pred_fallthru
      _
    // Predicated region
    $region6: #{tpu_custom_call.1} parent=1 // pred_check
      _
    $region7: #{tpu_custom_call.1} parent=1 // pred_check_branch
      %16 = sbr.rel (0) target = $region9
    $region8: #{tpu_custom_call.1} parent=1 // pred_region
      _
    $region9: #{tpu_custom_call.1} parent=1 // pred_fallthru
      _
    // Predicated region
    $region10: #{tpu_custom_call.1} parent=1 // pred_check
      _
    $region11: #{tpu_custom_call.1} parent=1 // pred_check_branch
      %18 = sbr.rel (0) target = $region13
    $region12: #{tpu_custom_call.1} parent=1 // pred_region
      %s20 = ssub.s32 640, 640
      %21 = vsyncadd [#allocation5], %s20
      %s22 = sshll.u32 [#allocation4], 4
      %s23 = int_to_ptr.vmem [resolvable:$true] %s22
      %28 = dma.hbm_to_vmem [thread:$0]  %s2, 640, %s23, [#allocation5], 128, 128, 8
    $region13: #{tpu_custom_call.1} parent=1 // pred_fallthru
      _
    // Predicated region
    $region14: #{tpu_custom_call.1} parent=1 // pred_check
      _
    $region15: #{tpu_custom_call.1} parent=1 // pred_check_branch
      %30 = sbr.rel (0) target = $region17
    $region16: #{tpu_custom_call.1} parent=1 // pred_region
      %31 = dma.done [#allocation5], 640
    $region17: #{tpu_custom_call.1} parent=1 // pred_fallthru
      _
    %p32 = scmp.eq.s32.totalorder 0, 0
    // Predicated region
    $region18: #{tpu_custom_call.1} parent=1 // pred_check
      %p33 = pneg %p32
    $region19: #{tpu_custom_call.1} parent=1 // pred_check_branch
      %35 = sbr.rel (%p33) target = $region21
    $region20: #{tpu_custom_call.1} parent=1 // pred_region
      %vm36 = vcmask 7168
      %37 = vst.msk [vmem:[#allocation2] sm:$0xff] %vm36, 0.0
      %38 = vst.msk [vmem:[#allocation3] sm:$0xff] %vm36, 0.0
    $region21: #{tpu_custom_call.1} parent=1 // pred_fallthru
      _
    %v39 = vld [vmem:[%s0] sm:$0xff]
    %v40 = vld [vmem:[#allocation4] sm:$0xff]
    %v41 = vld [vmem:[#allocation4 + $0x8] sm:$0xff]
    %v42 = vld [vmem:[#allocation4 + $0x10] sm:$0xff]
    %v43 = vld [vmem:[#allocation4 + $0x18] sm:$0xff]
    %v44 = vld [vmem:[#allocation4 + $0x20] sm:$0xf]
    %v45 = vld [vmem:[%s1] sm:$0xff]
    %47 = vset.pattern.permute.xlu0 0
    %48 = vperm.xlu0 %47, %v45
    %v49 = vpop.permute.xlu0 %48
    %vm51 = vcmask 293888
    %v53 = vsel %vm51, %v39, 0
    %vm55 = vcmask 1043456
    %v57 = vsel %vm55, %v44, 0
    %59 = vmatprep.subr.mxu0 0.0
    %60 = vmatpush1.msra.mxu0 %v40
    %61 = vmatprep.subr.mxu0 0.0
    %62 = vmatpush1.msra.mxu0 %v41
    %63 = vmatprep.subr.mxu0 0.0
    %64 = vmatpush1.msra.mxu0 %v42
    %65 = vmatprep.subr.mxu0 0.0
    %66 = vmatpush1.msra.mxu0 %v43
    %67 = vmatprep.subr.mxu0 0.0
    %68 = vmatpush1.msra.mxu0 %v57
    %69 = vmatprep.subr.mxu0 0.0
    %70 = vmatpush1.msra.mxu0 0.0
    %71 = vmatprep.subr.mxu0 0.0
    %72 = vmatpush1.msra.mxu0 0.0
    %73 = vmatprep.subr.mxu0 0.0
    %74 = vmatpush1.msra.mxu0 0.0
    %75 = vmatprep.subr.mxu0 0.0
    %76 = vmatpush1.msra.mxu0 0.0
    %77 = vmatprep.subr.mxu0 0.0
    %78 = vmatpush1.msra.mxu0 0.0
    %79 = vmatprep.subr.mxu0 0.0
    %80 = vmatpush1.msra.mxu0 0.0
    %81 = vmatprep.subr.mxu0 0.0
    %82 = vmatpush1.msra.mxu0 0.0
    %83 = vmatprep.subr.mxu0 0.0
    %84 = vmatpush1.msra.mxu0 0.0
    %85 = vmatprep.subr.mxu0 0.0
    %86 = vmatpush1.msra.mxu0 0.0
    %87 = vmatprep.subr.mxu0 0.0
    %88 = vmatpush1.msra.mxu0 0.0
    %89 = vmatprep.subr.mxu0 0.0
    %90 = vmatpush1.msra.mxu0 0.0
    %91 = vmatprep.subr.mxu0 0.0
    %92 = vmatpush1.msra.mxu0 0.0
    %93 = vmatprep.subr.mxu0 0.0
    %94 = vmatpush1.msra.mxu0 0.0
    %95 = vmatprep.subr.mxu0 0.0
    %96 = vmatpush1.msra.mxu0 0.0
    %97 = vmatprep.subr.mxu0 0.0
    %98 = vmatpush1.msra.mxu0 0.0
    %99 = vmatprep.subr.mxu0 0.0
    %100 = vmatpush1.msra.mxu0 0.0
    %101 = vmatprep.subr.mxu0 0.0
    %102 = vmatpush1.msra.mxu0 0.0
    %103 = vmatprep.subr.mxu0 0.0
    %104 = vmatpush1.msra.mxu0 0.0
    %105 = vmatprep.subr.mxu0 0.0
    %106 = vmatpush1.msra.mxu0 0.0
    %107 = vmatprep.subr.mxu0 0.0
    %108 = vmatpush1.msra.mxu0 0.0
    %109 = vmatprep.subr.mxu0 0.0
    %110 = vmatpush1.msra.mxu0 0.0
    %111 = vmatprep.subr.mxu0 0.0
    %112 = vmatpush1.msra.mxu0 0.0
    %113 = vmatprep.subr.mxu0 0.0
    %114 = vmatpush1.msra.mxu0 0.0
    %115 = vmatprep.subr.mxu0 0.0
    %116 = vmatpush1.msra.mxu0 0.0
    %117 = vmatprep.subr.mxu0 0.0
    %118 = vmatpush1.msra.mxu0 0.0
    %119 = vmatprep.subr.mxu0 0.0
    %120 = vmatpush1.msra.mxu0 0.0
    %121 = vmatprep.subr.mxu0 0.0
    %122 = vmatpush1.msra.mxu0 0.0
    %123 = vmatprep.mubr.f32.mxu0 0.0
    %124 = vmatmul.mubr.f32.gmra.mrb[0].mxu0 %v53
    %v125 = vpop.f32.mrb[0].mxu0
    %v126 = vadd.f32 %v49, %v125
    %v127 = vpop.f32.mrb[0].mxu0
    %128 = vdwg.mxu0
    %129 = vst [vmem:[#allocation7] sm:$0xff] %v126
    %v130 = vlaneseq
    %v131 = vand.u32 %v130, 127
    %s132 = smul.u32 0, 128
    %v133 = vstv %s132
    %v134 = vadd.s32 %v131, %v133
    %vm135 = vcmp.lt.s32.totalorder %v134, 128
    %v136 = vsel %vm135, %v126, 0.0
    %v137 = vld [vmem:[#allocation2] sm:$0xff]
    %138 = vadd.xlane.f32.xlu0 %v136
    %v139 = vpop.xlane.xlu0 %138
    %v140 = vadd.f32 %v137, %v139
    %vm141 = vcmask 7168
    %142 = vst.msk [vmem:[#allocation2] sm:$0xff] %vm141, %v140
    %v143 = vld [vmem:[#allocation3] sm:$0xff]
    %v144 = vmul.f32 %v136, %v136
    %145 = vadd.xlane.f32.xlu0 %v144
    %v146 = vpop.xlane.xlu0 %145
    %v147 = vadd.f32 %v143, %v146
    %148 = vst.msk [vmem:[#allocation3] sm:$0xff] %vm141, %v147
    // Predicated region
    $region22: #{tpu_custom_call.1} parent=1 // pred_check
      %p149 = pneg %p32
    $region23: #{tpu_custom_call.1} parent=1 // pred_check_branch
      %151 = sbr.rel (%p149) target = $region25
    $region24: #{tpu_custom_call.1} parent=1 // pred_region
      %v152 = vld [vmem:[#allocation2] sm:$0xff]
      %v153 = vmul.f32 %v152, 0.0078125
      %v154 = vld [vmem:[#allocation3] sm:$0xff]
      %v155 = vmul.f32 %v154, 0.0078125
      %v156 = vmul.f32 %v153, %v153
      %v157 = vsub.f32 %v155, %v156
      %v158 = vmax.f32 %v157, 0.0
      %159 = vst.msk [vmem:[%s4] sm:$0xff] %vm141, %v153
      %v160 = vadd.f32 %v158, 1e-05
      %v161 = vrsqrt.pop %v160
      %162 = vst.msk [vmem:[%s5] sm:$0xff] %vm141, %v161
    $region25: #{tpu_custom_call.1} parent=1 // pred_fallthru
      _
    // Predicated region
    $region26: #{tpu_custom_call.1} parent=1 // pred_check
      _
    $region27: #{tpu_custom_call.1} parent=1 // pred_check_branch
      %164 = sbr.rel (0) target = $region29
    $region28: #{tpu_custom_call.1} parent=1 // pred_region
      %s166 = ssub.s32 128, 128
      %167 = vsyncadd [#allocation6], %s166
      %s169 = sshll.u32 [#allocation7], 4
      %s170 = int_to_ptr.vmem [resolvable:$true] %s169
      %172 = dma.vmem_to_hbm [thread:$0]  %s170, 128, %s3, [#allocation6]
    $region29: #{tpu_custom_call.1} parent=1 // pred_fallthru
      _
    // Predicated region
    $region30: #{tpu_custom_call.1} parent=1 // pred_check
      _
    $region31: #{tpu_custom_call.1} parent=1 // pred_check_branch
      %174 = sbr.rel (0) target = $region33
    $region32: #{tpu_custom_call.1} parent=1 // pred_region
      _
    $region33: #{tpu_custom_call.1} parent=1 // pred_fallthru
      _
    // Predicated region
    $region34: #{tpu_custom_call.1} parent=1 // pred_check
      _
    $region35: #{tpu_custom_call.1} parent=1 // pred_check_branch
      %176 = sbr.rel (0) target = $region37
    $region36: #{tpu_custom_call.1} parent=1 // pred_region
      _
    $region37: #{tpu_custom_call.1} parent=1 // pred_fallthru
      _
    // Predicated region
    $region38: #{tpu_custom_call.1} parent=1 // pred_check
      _
    $region39: #{tpu_custom_call.1} parent=1 // pred_check_branch
      %178 = sbr.rel (0) target = $region41
    $region40: #{tpu_custom_call.1} parent=1 // pred_region
      %179 = dma.done [#allocation6], 128
    $region41: #{tpu_custom_call.1} parent=1 // pred_fallthru
      _
    // Predicated region
    $region42: #{tpu_custom_call.1} parent=1 // pred_check
      _
    $region43: #{tpu_custom_call.1} parent=1 // pred_check_branch
      %181 = sbr.rel (0) target = $region45
    $region44: #{tpu_custom_call.1} parent=1 // pred_region
      _
    $region45: #{tpu_custom_call.1} parent=1 // pred_fallthru
      _
    // Predicated region
    $region46: #{tpu_custom_call.1} parent=1 // pred_check
      _
    $region47: #{tpu_custom_call.1} parent=1 // pred_check_branch
      %183 = sbr.rel (0) target = $region49
    $region48: #{tpu_custom_call.1} parent=1 // pred_region
      _
    $region49: #{tpu_custom_call.1} parent=1 // pred_fallthru
      _
    %184 = vsyncpa [#allocation5], 1
    %185 = vsyncpa [#allocation6], 1

</llo_original>
